<compile_context>
chip_gen: v6e
topology: v6e:2x2x1
jax: 0.10.0
libtpu: 0.0.40
codegen_flags: <defaults>
</compile_context>

<pallas_src>
import functools

import jax
import jax.numpy as jnp
from jax.experimental import pallas as pl
from jax.experimental.pallas import tpu as pltpu

LANE = 128
SUBLANE = 8
VMEM_BUDGET = 48 << 20           # conservative: fits v7x's 64 MiB physical VMEM
DEFAULT_TF = 512


def _round_up(n, m):
    return ((n + m - 1) // m) * m


def prepare_sae_params(w_enc, b_enc, w_dec, b_dec, tf=DEFAULT_TF):
    """One-time layout plumbing (call once, NOT per forward).

    w_enc: (F, D)  torch Linear(D->F).weight
    w_dec: (D, F)  torch Linear(F->D).weight
    Returns kernel-layout params: W_enc as (Dp, Fp) bf16, W_dec as (Fp, Dp) bf16,
    biases lane-aligned f32 rows, plus the true (D, F) for un-padding outputs.
    Fp is padded to a multiple of the target feature tile `tf` so the kernel
    never has to degrade its feature tile.
    """
    F, D = w_enc.shape
    Dp = _round_up(D, LANE)
    Fp = _round_up(F, max(tf, LANE))
    we = jnp.zeros((Dp, Fp), jnp.bfloat16).at[:D, :F].set(
        jnp.asarray(w_enc).T.astype(jnp.bfloat16))
    wd = jnp.zeros((Fp, Dp), jnp.bfloat16).at[:F, :D].set(
        jnp.asarray(w_dec).T.astype(jnp.bfloat16))
    be = jnp.zeros((1, Fp), jnp.float32).at[0, :F].set(
        jnp.asarray(b_enc, jnp.float32))
    bd = jnp.zeros((1, Dp), jnp.float32).at[0, :D].set(
        jnp.asarray(b_dec, jnp.float32))
    return we, be, wd, bd, D, F


def sae_forward_kernel(x_ref, we_ref, be_ref, wd_ref, bd_ref,
                       xhat_ref, acts_ref):
    """One (batch_tile, feature_tile) step: encode + ReLU + partial decode."""
    fi = pl.program_id(1)

    # Encoder matmul on the MXU: (TM, Dp) bf16 @ (Dp, TF) bf16 -> f32.
    pre = jnp.dot(x_ref[...], we_ref[...], preferred_element_type=jnp.float32)
    # f32 bias-add + ReLU on the VPU (v5e-safe), then a single cast to bf16.
    acts = jnp.maximum(pre + be_ref[...], 0.0).astype(acts_ref.dtype)
    acts_ref[...] = acts

    # Decoder partial sum: (TM, TF) bf16 @ (TF, Dp) bf16 accumulated directly
    # into the resident f32 x_hat output tile (index (i, 0) is constant over f).
    partial = jnp.dot(acts, wd_ref[...], preferred_element_type=jnp.float32)

    @pl.when(fi == 0)
    def _():
        xhat_ref[...] = partial

    @pl.when(fi > 0)
    def _():
        xhat_ref[...] += partial

    @pl.when(fi == pl.num_programs(1) - 1)
    def _():
        xhat_ref[...] += bd_ref[...]          # broadcast (1, Dp) over (TM, Dp)


def _vmem_bytes(tm, tf, Dp):
    """Estimate of double-buffered VMEM footprint for one grid step."""
    bf2, f4 = 2, 4
    return (2 * tm * Dp * bf2        # x tile (bf16)
            + 2 * Dp * tf * bf2      # W_enc tile
            + 2 * tf * Dp * bf2      # W_dec tile
            + 2 * tf * f4            # b_enc tile
            + 2 * Dp * f4            # b_dec
            + 2 * tm * Dp * f4       # x_hat output tile (f32, resident acc)
            + 2 * tm * tf * bf2)     # acts output tile (bf16)


def _fit_tf(tf, Fp):
    tf = max(LANE, min(tf, Fp))
    while Fp % tf != 0:              # fallback only; prepare_sae_params pads Fp
        tf -= LANE
    return tf


@functools.partial(jax.jit, static_argnums=(5, 6, 7, 8))
def sae_forward(x, we, be, wd, bd, d_in, n_features, tm=512, tf=DEFAULT_TF):
    """SAE forward. x: (B, D); (we, be, wd, bd) from prepare_sae_params.

    Returns (x_hat f32, acts bf16, err_hat f32-zeros).  Note: x_hat is decoded
    from the bf16-rounded acts (same values the kernel stores).
    """
    B, D = x.shape
    assert D == d_in
    Dp, Fp = we.shape

    # --- batch tile: multiple of 8 sublanes, >=2 tiles when possible (megacore)
    b_pad8 = _round_up(B, SUBLANE)
    tm = _round_up(min(tm, b_pad8), SUBLANE)
    if b_pad8 > SUBLANE and b_pad8 // tm < 2:
        tm = _round_up(-(-b_pad8 // 2), SUBLANE)     # ceil(b_pad8/2), 8-aligned
    Bp = _round_up(B, tm)

    # --- feature tile: multiple of 128 lanes dividing the padded feature dim
    tf = _fit_tf(tf, Fp)

    # --- shrink tiles to the VMEM budget (v7x has only 64 MiB physical VMEM)
    while _vmem_bytes(tm, tf, Dp) > VMEM_BUDGET:
        if tf > LANE:
            tf = _fit_tf(tf // 2, Fp)
        elif tm > SUBLANE:
            tm = max(SUBLANE, _round_up(tm // 2, SUBLANE))
            Bp = _round_up(B, tm)
        else:
            # TODO(synk): for very large Dp (>= 8192) add a third grid axis
            # tiling Dp (encoder contraction / decoder output columns) instead
            # of relying on tiny tm/tf.
            break

    est = _vmem_bytes(tm, tf, Dp)
    vmem_limit = min(max(32 << 20, int(est * 1.25) + (2 << 20)), 100 << 20)

    # --- pad / cast x only when needed
    if (B, D) == (Bp, Dp):
        x_p = x.astype(jnp.bfloat16)
    else:
        x_p = jnp.zeros((Bp, Dp), jnp.bfloat16).at[:B, :D].set(
            x.astype(jnp.bfloat16))

    grid = (Bp // tm, Fp // tf)
    out_shapes = (
        jax.ShapeDtypeStruct((Bp, Dp), jnp.float32),    # x_hat (padded)
        jax.ShapeDtypeStruct((Bp, Fp), jnp.bfloat16),   # acts  (padded, bf16)
    )
    x_hat_p, acts_p = pl.pallas_call(
        sae_forward_kernel,
        out_shape=out_shapes,
        grid_spec=pltpu.PrefetchScalarGridSpec(
            num_scalar_prefetch=0,
            grid=grid,
            in_specs=[
                pl.BlockSpec((tm, Dp), lambda i, f: (i, 0)),   # x tile, resident over F
                pl.BlockSpec((Dp, tf), lambda i, f: (0, f)),   # W_enc column tile
                pl.BlockSpec((1, tf), lambda i, f: (0, f)),    # b_enc tile
                pl.BlockSpec((tf, Dp), lambda i, f: (f, 0)),   # W_dec row tile
                pl.BlockSpec((1, Dp), lambda i, f: (0, 0)),    # b_dec
            ],
            out_specs=(
                pl.BlockSpec((tm, Dp), lambda i, f: (i, 0)),   # x_hat (in-place acc)
                pl.BlockSpec((tm, tf), lambda i, f: (i, f)),   # acts
            ),
        ),
        compiler_params=pltpu.CompilerParams(
            dimension_semantics=("parallel", "arbitrary"),
            vmem_limit_bytes=vmem_limit),
        # TODO(synk): sweep pipeline_mode=pl.Buffered(3) on the weight specs if
        # profiling shows exposed DMA between feature steps (small tf / v7x).
    )(x_p, we, be, wd, bd)

    x_hat = x_hat_p[:B, :D]
    acts = acts_p[:B, :n_features]
    # BaseSAE defines no auxiliary error head; err_hat is identically zero and
    # is produced outside the kernel (constant-folded by XLA).
    err_hat = jnp.zeros_like(x_hat)
    return x_hat, acts, err_hat


if __name__ == "__main__":
    # Small shapes consistent with an SAE: batch=8, d_in=32, features=64.
    B, D, F = 8, 32, 64
    key = jax.random.PRNGKey(0)
    kx, ke, kd, kbe, kbd = jax.random.split(key, 5)

    x = jax.random.normal(kx, (B, D), dtype=jnp.float32)
    w_enc = jax.random.normal(ke, (F, D), dtype=jnp.float32) * 0.1   # Linear(D->F).weight
    b_enc = jax.random.normal(kbe, (F,), dtype=jnp.float32) * 0.01
    w_dec = jax.random.normal(kd, (D, F), dtype=jnp.float32)         # Linear(F->D).weight
    # ConstrainedAdam keeps decoder columns at unit norm (norm over dim=0).
    w_dec = w_dec / jnp.linalg.norm(w_dec, axis=0, keepdims=True)
    b_dec = jax.random.normal(kbd, (D,), dtype=jnp.float32) * 0.01

    # One-time layout conversion (would be cached alongside the params).
    params = prepare_sae_params(w_enc, b_enc, w_dec, b_dec)

    x_hat, acts, err_hat = sae_forward(x, *params)
    jax.block_until_ready((x_hat, acts, err_hat))

    # Pure-JAX f32 reference (same semantics as the PyTorch forward contract).
    acts_ref = jnp.maximum(x @ w_enc.T + b_enc, 0.0)
    x_hat_ref = acts_ref @ w_dec.T + b_dec

    assert x_hat.shape == (B, D) and acts.shape == (B, F) and err_hat.shape == (B, D)
    assert acts.dtype == jnp.bfloat16
    # bf16 matmul operands / bf16 acts with f32 accumulation -> loosened tolerances.
    acts_f32 = acts.astype(jnp.float32)
    assert jnp.allclose(acts_f32, acts_ref, atol=5e-2, rtol=5e-2), \
        float(jnp.max(jnp.abs(acts_f32 - acts_ref)))
    assert jnp.allclose(x_hat, x_hat_ref, atol=5e-2, rtol=5e-2), \
        float(jnp.max(jnp.abs(x_hat - x_hat_ref)))
    assert jnp.all(err_hat == 0)

    print("KERNEL_OK")
</pallas_src>

<mosaic_0001>
module attributes {stable_mosaic.version = 11 : i64} {
  func.func @sae_forward_kernel(%arg0: i32, %arg1: i32, %arg2: memref<8x128xbf16, #tpu.memory_space<vmem>>, %arg3: memref<128x512xbf16, #tpu.memory_space<vmem>>, %arg4: memref<1x512xf32, #tpu.memory_space<vmem>>, %arg5: memref<512x128xbf16, #tpu.memory_space<vmem>>, %arg6: memref<1x128xf32, #tpu.memory_space<vmem>>, %arg7: memref<8x128xf32, #tpu.memory_space<vmem>>, %arg8: memref<8x512xbf16, #tpu.memory_space<vmem>>) attributes {dimension_semantics = [#tpu.dimension_semantics<parallel>, #tpu.dimension_semantics<arbitrary>], iteration_bounds = array<i64: 1, 1>, scalar_prefetch = 0 : i64, scratch_operands = 0 : i64, tpu.core_type = #tpu.core_type<tc>, window_params = [{transform_indices = @transform_0, window_bounds = array<i64: 8, 128>}, {transform_indices = @transform_1, window_bounds = array<i64: 128, 512>}, {transform_indices = @transform_2, window_bounds = array<i64: 1, 512>}, {transform_indices = @transform_3, window_bounds = array<i64: 512, 128>}, {pipeline_mode = #tpu.pipeline_mode<synchronous>, transform_indices = @transform_4, window_bounds = array<i64: 1, 128>}, {transform_indices = @transform_5, window_bounds = array<i64: 8, 128>}, {transform_indices = @transform_6, window_bounds = array<i64: 8, 512>}]} {
    %c0 = arith.constant 0 : index
    %c0_0 = arith.constant 0 : index
    %0 = vector.load %arg2[%c0, %c0_0] : memref<8x128xbf16, #tpu.memory_space<vmem>>, vector<8x128xbf16>
    %c0_1 = arith.constant 0 : index
    %c0_2 = arith.constant 0 : index
    %1 = vector.load %arg3[%c0_1, %c0_2] : memref<128x512xbf16, #tpu.memory_space<vmem>>, vector<128x512xbf16>
    %cst = arith.constant dense<0.000000e+00> : vector<8x512xf32>
    %2 = tpu.matmul %0, %1, %cst {dimension_numbers = #tpu.dot_dimension_numbers<[1], [0], [0], [1], [0, 0, 1, 1], [], []>} : vector<8x128xbf16>, vector<128x512xbf16>, vector<8x512xf32> -> vector<8x512xf32>
    %c0_3 = arith.constant 0 : index
    %c0_4 = arith.constant 0 : index
    %3 = vector.load %arg4[%c0_3, %c0_4] : memref<1x512xf32, #tpu.memory_space<vmem>>, vector<1x512xf32>
    %4 = vector.broadcast %3 : vector<1x512xf32> to vector<8x512xf32>
    %5 = arith.addf %2, %4 : vector<8x512xf32>
    %cst_5 = arith.constant 0.000000e+00 : f32
    %6 = vector.broadcast %cst_5 : f32 to vector<8x512xf32>
    %7 = arith.maximumf %5, %6 : vector<8x512xf32>
    %8 = arith.truncf %7 : vector<8x512xf32> to vector<8x512xbf16>
    %c0_6 = arith.constant 0 : index
    %c0_7 = arith.constant 0 : index
    %9 = vector.load %arg8[%c0_6, %c0_7] : memref<8x512xbf16, #tpu.memory_space<vmem>>, vector<8x512xbf16>
    tpu.vector_store %arg8[%c0_6, %c0_7], %8 {strides = array<i32>} : memref<8x512xbf16, #tpu.memory_space<vmem>>, vector<8x512xbf16>,
    %c0_8 = arith.constant 0 : index
    %c0_9 = arith.constant 0 : index
    %10 = vector.load %arg5[%c0_8, %c0_9] : memref<512x128xbf16, #tpu.memory_space<vmem>>, vector<512x128xbf16>
    %cst_10 = arith.constant dense<0.000000e+00> : vector<8x128xf32>
    %11 = tpu.matmul %8, %10, %cst_10 {dimension_numbers = #tpu.dot_dimension_numbers<[1], [0], [0], [1], [0, 0, 1, 1], [], []>} : vector<8x512xbf16>, vector<512x128xbf16>, vector<8x128xf32> -> vector<8x128xf32>
    %c0_i32 = arith.constant 0 : i32
    %12 = arith.cmpi eq, %arg1, %c0_i32 : i32
    %13 = arith.extui %12 : i1 to i32
    %c0_i32_11 = arith.constant 0 : i32
    %14 = arith.cmpi ne, %13, %c0_i32_11 : i32
    scf.if %14 {
      %c0_16 = arith.constant 0 : index
      %c0_17 = arith.constant 0 : index
      %21 = vector.load %arg7[%c0_16, %c0_17] : memref<8x128xf32, #tpu.memory_space<vmem>>, vector<8x128xf32>
      tpu.vector_store %arg7[%c0_16, %c0_17], %11 {strides = array<i32>} : memref<8x128xf32, #tpu.memory_space<vmem>>, vector<8x128xf32>,
    } else {
    }
    %c0_i32_12 = arith.constant 0 : i32
    %15 = arith.cmpi sgt, %arg1, %c0_i32_12 : i32
    %16 = arith.extui %15 : i1 to i32
    %c0_i32_13 = arith.constant 0 : i32
    %17 = arith.cmpi ne, %16, %c0_i32_13 : i32
    scf.if %17 {
      %c0_16 = arith.constant 0 : index
      %c0_17 = arith.constant 0 : index
      %21 = vector.load %arg7[%c0_16, %c0_17] : memref<8x128xf32, #tpu.memory_space<vmem>>, vector<8x128xf32>
      %22 = arith.addf %21, %11 : vector<8x128xf32>
      %c0_18 = arith.constant 0 : index
      %c0_19 = arith.constant 0 : index
      %23 = vector.load %arg7[%c0_18, %c0_19] : memref<8x128xf32, #tpu.memory_space<vmem>>, vector<8x128xf32>
      tpu.vector_store %arg7[%c0_18, %c0_19], %22 {strides = array<i32>} : memref<8x128xf32, #tpu.memory_space<vmem>>, vector<8x128xf32>,
    } else {
    }
    %c0_i32_14 = arith.constant 0 : i32
    %18 = arith.cmpi eq, %arg1, %c0_i32_14 : i32
    %19 = arith.extui %18 : i1 to i32
    %c0_i32_15 = arith.constant 0 : i32
    %20 = arith.cmpi ne, %19, %c0_i32_15 : i32
    scf.if %20 {
      %c0_16 = arith.constant 0 : index
      %c0_17 = arith.constant 0 : index
      %21 = vector.load %arg7[%c0_16, %c0_17] : memref<8x128xf32, #tpu.memory_space<vmem>>, vector<8x128xf32>
      %c0_18 = arith.constant 0 : index
      %c0_19 = arith.constant 0 : index
      %22 = vector.load %arg6[%c0_18, %c0_19] : memref<1x128xf32, #tpu.memory_space<vmem>>, vector<1x128xf32>
      %23 = vector.broadcast %22 : vector<1x128xf32> to vector<8x128xf32>
      %24 = arith.addf %21, %23 : vector<8x128xf32>
      %c0_20 = arith.constant 0 : index
      %c0_21 = arith.constant 0 : index
      %25 = vector.load %arg7[%c0_20, %c0_21] : memref<8x128xf32, #tpu.memory_space<vmem>>, vector<8x128xf32>
      tpu.vector_store %arg7[%c0_20, %c0_21], %24 {strides = array<i32>} : memref<8x128xf32, #tpu.memory_space<vmem>>, vector<8x128xf32>,
    } else {
    }
    return
  }
  func.func @transform_0(%arg0: i32, %arg1: i32) -> (i32, i32) {
    %c0_i32 = arith.constant 0 : i32
    %c0_i32_0 = arith.constant 0 : i32
    return %arg0, %c0_i32 : i32, i32
  }
  func.func @transform_1(%arg0: i32, %arg1: i32) -> (i32, i32) {
    %c0_i32 = arith.constant 0 : i32
    %c0_i32_0 = arith.constant 0 : i32
    return %c0_i32, %arg1 : i32, i32
  }
  func.func @transform_2(%arg0: i32, %arg1: i32) -> (i32, i32) {
    %c0_i32 = arith.constant 0 : i32
    %c0_i32_0 = arith.constant 0 : i32
    return %c0_i32, %arg1 : i32, i32
  }
  func.func @transform_3(%arg0: i32, %arg1: i32) -> (i32, i32) {
    %c0_i32 = arith.constant 0 : i32
    %c0_i32_0 = arith.constant 0 : i32
    return %arg1, %c0_i32 : i32, i32
  }
  func.func @transform_4(%arg0: i32, %arg1: i32) -> (i32, i32) {
    %c0_i32 = arith.constant 0 : i32
    %c0_i32_0 = arith.constant 0 : i32
    %c0_i32_1 = arith.constant 0 : i32
    return %c0_i32, %c0_i32_0 : i32, i32
  }
  func.func @transform_5(%arg0: i32, %arg1: i32) -> (i32, i32) {
    %c0_i32 = arith.constant 0 : i32
    %c0_i32_0 = arith.constant 0 : i32
    return %arg0, %c0_i32 : i32, i32
  }
  func.func @transform_6(%arg0: i32, %arg1: i32) -> (i32, i32) {
    %c0_i32 = arith.constant 0 : i32
    return %arg0, %arg1 : i32, i32
  }
}

</mosaic_0001>

<llo_original>
// kernel: sae_forward.1
$region0: #{sae_forward.1}
  #allocation0 [shape = 'u32[]', space=smem, size = 0x4, offset = 0x4, fixed_abs, tag = 'smem constant byte address 0x4 - core index']
  #allocation1 [shape = 'u32[144,128]{1,0:T(1,128)}', space=vmem, size = 0x12000, scoped, tag = 'internal scratch']
  %s0 = inlined_call_operand.vmem [shape: bf16[8,128], index: 0, kind: input, shape index: {}]
  %s1 = inlined_call_operand.hbm [shape: bf16[128,512], index: 1, kind: input, shape index: {}]
  %s2 = inlined_call_operand.vmem [shape: f32[1,512], index: 2, kind: input, shape index: {}]
  %s3 = inlined_call_operand.hbm [shape: bf16[512,128], index: 3, kind: input, shape index: {}]
  %s4 = inlined_call_operand.vmem [shape: f32[1,128], index: 4, kind: input, shape index: {}]
  %s5 = inlined_call_operand.hbm [shape: f32[8,128], index: 5, kind: output, shape index: {0}]
  %s6 = inlined_call_operand.vmem [shape: bf16[8,512], index: 6, kind: output, shape index: {1}]
  %7 = xla_tuple %s5, %s6
  %s8 = sld [smem:[#allocation0]]
  $region58: #{sae_forward.1} parent=0
    _
  %s10 = ssub.s32 1, %s8
  %s11 = scalar_select 0, %s10, %s8
  $region1: #{sae_forward.1} parent=0
    #allocation2 [shape = 'u8[131072]{0}', space=vmem, size = 0x20000, scoped, tag = 'input window, operand 1, single buffered']
    #allocation3 [shape = 's32[1]{0}', space=sflag, size = 0x4, scoped, tag = 'scoped memory for sae_forward.1']
    #allocation4 [shape = 's32[1]{0}', space=sflag, size = 0x4, scoped, tag = 'scoped memory for sae_forward.1']
    #allocation5 [shape = 'u8[131072]{0}', space=vmem, size = 0x20000, scoped, tag = 'input window, operand 3, single buffered']
    #allocation6 [shape = 's32[1]{0}', space=sflag, size = 0x4, scoped, tag = 'scoped memory for sae_forward.1']
    #allocation7 [shape = 'u8[4096]{0}', space=vmem, size = 0x1000, scoped, tag = 'output window, operand 0, single buffered']
    %12 = vsyncpa [#allocation3], 0
    %13 = vsyncpa [#allocation6], 0
    %14 = vsyncpa [#allocation4], 0
    // Predicated region
    $region2: #{sae_forward.1} parent=1 // pred_check
      _
    $region3: #{sae_forward.1} parent=1 // pred_check_branch
      %16 = sbr.rel (0) target = $region5
    $region4: #{sae_forward.1} parent=1 // pred_region
      _
    $region5: #{sae_forward.1} parent=1 // pred_fallthru
      _
    // Predicated region
    $region6: #{sae_forward.1} parent=1 // pred_check
      _
    $region7: #{sae_forward.1} parent=1 // pred_check_branch
      %18 = sbr.rel (0) target = $region9
    $region8: #{sae_forward.1} parent=1 // pred_region
      %s20 = ssub.s32 4096, 4096
      %21 = vsyncadd [#allocation3], %s20
      %s22 = sshll.u32 [#allocation2], 4
      %s23 = int_to_ptr.vmem [resolvable:$true] %s22
      %28 = dma.hbm_to_vmem [thread:$0]  %s1, 4096, %s23, [#allocation3], 256, 256, 16
    $region9: #{sae_forward.1} parent=1 // pred_fallthru
      _
    // Predicated region
    $region10: #{sae_forward.1} parent=1 // pred_check
      _
    $region11: #{sae_forward.1} parent=1 // pred_check_branch
      %30 = sbr.rel (0) target = $region13
    $region12: #{sae_forward.1} parent=1 // pred_region
      _
    $region13: #{sae_forward.1} parent=1 // pred_fallthru
      _
    // Predicated region
    $region14: #{sae_forward.1} parent=1 // pred_check
      _
    $region15: #{sae_forward.1} parent=1 // pred_check_branch
      %32 = sbr.rel (0) target = $region17
    $region16: #{sae_forward.1} parent=1 // pred_region
      %s34 = ssub.s32 4096, 4096
      %35 = vsyncadd [#allocation6], %s34
      %s36 = sshll.u32 [#allocation5], 4
      %s37 = int_to_ptr.vmem [resolvable:$true] %s36
      %42 = dma.hbm_to_vmem [thread:$0]  %s3, 4096, %s37, [#allocation6], 64, 64, 4
    $region17: #{sae_forward.1} parent=1 // pred_fallthru
      _
    // Predicated region
    $region18: #{sae_forward.1} parent=1 // pred_check
      _
    $region19: #{sae_forward.1} parent=1 // pred_check_branch
      %44 = sbr.rel (0) target = $region21
    $region20: #{sae_forward.1} parent=1 // pred_region
      _
    $region21: #{sae_forward.1} parent=1 // pred_fallthru
      _
    // Predicated region
    $region22: #{sae_forward.1} parent=1 // pred_check
      _
    $region23: #{sae_forward.1} parent=1 // pred_check_branch
      %46 = sbr.rel (0) target = $region25
    $region24: #{sae_forward.1} parent=1 // pred_region
      %47 = dma.done [#allocation3], 4096
    $region25: #{sae_forward.1} parent=1 // pred_fallthru
      _
    // Predicated region
    $region26: #{sae_forward.1} parent=1 // pred_check
      _
    $region27: #{sae_forward.1} parent=1 // pred_check_branch
      %49 = sbr.rel (0) target = $region29
    $region28: #{sae_forward.1} parent=1 // pred_region
      %50 = dma.done [#allocation6], 4096
    $region29: #{sae_forward.1} parent=1 // pred_fallthru
      _
    %v52 = vld [vmem:[%s0] sm:$0xf]
    %v53 = vld [vmem:[#allocation2] sm:$0xff]
    %v54 = vld [vmem:[#allocation2 + $0x8] sm:$0xff]
    %v55 = vld [vmem:[#allocation2 + $0x10] sm:$0xff]
    %v56 = vld [vmem:[#allocation2 + $0x18] sm:$0xff]
    %v57 = vld [vmem:[#allocation2 + $0x20] sm:$0xff]
    %v58 = vld [vmem:[#allocation2 + $0x28] sm:$0xff]
    %v59 = vld [vmem:[#allocation2 + $0x30] sm:$0xff]
    %v60 = vld [vmem:[#allocation2 + $0x38] sm:$0xff]
    %v61 = vld [vmem:[#allocation2 + $0x40] sm:$0xff]
    %v62 = vld [vmem:[#allocation2 + $0x48] sm:$0xff]
    %v63 = vld [vmem:[#allocation2 + $0x50] sm:$0xff]
    %v64 = vld [vmem:[#allocation2 + $0x58] sm:$0xff]
    %v65 = vld [vmem:[#allocation2 + $0x60] sm:$0xff]
    %v66 = vld [vmem:[#allocation2 + $0x68] sm:$0xff]
    %v67 = vld [vmem:[#allocation2 + $0x70] sm:$0xff]
    %v68 = vld [vmem:[#allocation2 + $0x78] sm:$0xff]
    %v69 = vld [vmem:[#allocation2 + $0x80] sm:$0xff]
    %v70 = vld [vmem:[#allocation2 + $0x88] sm:$0xff]
    %v71 = vld [vmem:[#allocation2 + $0x90] sm:$0xff]
    %v72 = vld [vmem:[#allocation2 + $0x98] sm:$0xff]
    %v73 = vld [vmem:[#allocation2 + $0xa0] sm:$0xff]
    %v74 = vld [vmem:[#allocation2 + $0xa8] sm:$0xff]
    %v75 = vld [vmem:[#allocation2 + $0xb0] sm:$0xff]
    %v76 = vld [vmem:[#allocation2 + $0xb8] sm:$0xff]
    %v77 = vld [vmem:[#allocation2 + $0xc0] sm:$0xff]
    %v78 = vld [vmem:[#allocation2 + $0xc8] sm:$0xff]
    %v79 = vld [vmem:[#allocation2 + $0xd0] sm:$0xff]
    %v80 = vld [vmem:[#allocation2 + $0xd8] sm:$0xff]
    %v81 = vld [vmem:[#allocation2 + $0xe0] sm:$0xff]
    %v82 = vld [vmem:[#allocation2 + $0xe8] sm:$0xff]
    %v83 = vld [vmem:[#allocation2 + $0xf0] sm:$0xff]
    %v84 = vld [vmem:[#allocation2 + $0xf8] sm:$0xff]
    %v85 = vld [vmem:[%s2] sm:$0xf]
    %v87 = vlaneseq
    %v88 = vshrl.u32 %v87, 7
    %v89 = vsub.s32 0, %v88
    %v90 = vrot.slane %v85, %v89
    %v91 = vlaneseq
    %v92 = vshrl.u32 %v91, 7
    %v93 = vsub.s32 1, %v92
    %v94 = vrot.slane %v85, %v93
    %v95 = vlaneseq
    %v96 = vshrl.u32 %v95, 7
    %v97 = vsub.s32 2, %v96
    %v98 = vrot.slane %v85, %v97
    %v99 = vlaneseq
    %v100 = vshrl.u32 %v99, 7
    %v101 = vsub.s32 3, %v100
    %v102 = vrot.slane %v85, %v101
    %v139 = vunpack.c.l.b16 %v53
    %v140 = vunpack.c.h.b16 %v53
    %v141 = vunpack.c.l.b16 %v54
    %v142 = vunpack.c.h.b16 %v54
    %v143 = vunpack.c.l.b16 %v55
    %v144 = vunpack.c.h.b16 %v55
    %v145 = vunpack.c.l.b16 %v56
    %v146 = vunpack.c.h.b16 %v56
    %v147 = vunpack.c.l.b16 %v57
    %v148 = vunpack.c.h.b16 %v57
    %v149 = vunpack.c.l.b16 %v58
    %v150 = vunpack.c.h.b16 %v58
    %v151 = vunpack.c.l.b16 %v59
    %v152 = vunpack.c.h.b16 %v59
    %v153 = vunpack.c.l.b16 %v60
    %v154 = vunpack.c.h.b16 %v60
    %v155 = vunpack.c.l.b16 %v61
    %v156 = vunpack.c.h.b16 %v61
    %v157 = vunpack.c.l.b16 %v62
    %v158 = vunpack.c.h.b16 %v62
    %v159 = vunpack.c.l.b16 %v63
    %v160 = vunpack.c.h.b16 %v63
    %v161 = vunpack.c.l.b16 %v64
    %v162 = vunpack.c.h.b16 %v64
    %v163 = vunpack.c.l.b16 %v65
    %v164 = vunpack.c.h.b16 %v65
    %v165 = vunpack.c.l.b16 %v66
    %v166 = vunpack.c.h.b16 %v66
    %v167 = vunpack.c.l.b16 %v67
    %v168 = vunpack.c.h.b16 %v67
    %v169 = vunpack.c.l.b16 %v68
    %v170 = vunpack.c.h.b16 %v68
    %v171 = vunpack.c.l.b16 %v69
    %v172 = vunpack.c.h.b16 %v69
    %v173 = vunpack.c.l.b16 %v70
    %v174 = vunpack.c.h.b16 %v70
    %v175 = vunpack.c.l.b16 %v71
    %v176 = vunpack.c.h.b16 %v71
    %v177 = vunpack.c.l.b16 %v72
    %v178 = vunpack.c.h.b16 %v72
    %v179 = vunpack.c.l.b16 %v73
    %v180 = vunpack.c.h.b16 %v73
    %v181 = vunpack.c.l.b16 %v74
    %v182 = vunpack.c.h.b16 %v74
    %v183 = vunpack.c.l.b16 %v75
    %v184 = vunpack.c.h.b16 %v75
    %v185 = vunpack.c.l.b16 %v76
    %v186 = vunpack.c.h.b16 %v76
    %v187 = vunpack.c.l.b16 %v77
    %v188 = vunpack.c.h.b16 %v77
    %v189 = vunpack.c.l.b16 %v78
    %v190 = vunpack.c.h.b16 %v78
    %v191 = vunpack.c.l.b16 %v79
    %v192 = vunpack.c.h.b16 %v79
    %v193 = vunpack.c.l.b16 %v80
    %v194 = vunpack.c.h.b16 %v80
    %v195 = vunpack.c.l.b16 %v81
    %v196 = vunpack.c.h.b16 %v81
    %v197 = vunpack.c.l.b16 %v82
    %v198 = vunpack.c.h.b16 %v82
    %v199 = vunpack.c.l.b16 %v83
    %v200 = vunpack.c.h.b16 %v83
    %v201 = vunpack.c.l.b16 %v84
    %v202 = vunpack.c.h.b16 %v84
    %v203 = vpack.c.b16 %v143, %v139
    %v204 = vpack.c.b16 %v144, %v140
    %v205 = vpack.c.b16 %v145, %v141
    %v206 = vpack.c.b16 %v146, %v142
    %v207 = vpack.c.b16 %v151, %v147
    %v208 = vpack.c.b16 %v152, %v148
    %v209 = vpack.c.b16 %v153, %v149
    %v210 = vpack.c.b16 %v154, %v150
    %v211 = vpack.c.b16 %v159, %v155
    %v212 = vpack.c.b16 %v160, %v156
    %v213 = vpack.c.b16 %v161, %v157
    %v214 = vpack.c.b16 %v162, %v158
    %v215 = vpack.c.b16 %v167, %v163
    %v216 = vpack.c.b16 %v168, %v164
    %v217 = vpack.c.b16 %v169, %v165
    %v218 = vpack.c.b16 %v170, %v166
    %v219 = vpack.c.b16 %v175, %v171
    %v220 = vpack.c.b16 %v176, %v172
    %v221 = vpack.c.b16 %v177, %v173
    %v222 = vpack.c.b16 %v178, %v174
    %v223 = vpack.c.b16 %v183, %v179
    %v224 = vpack.c.b16 %v184, %v180
    %v225 = vpack.c.b16 %v185, %v181
    %v226 = vpack.c.b16 %v186, %v182
    %v227 = vpack.c.b16 %v191, %v187
    %v228 = vpack.c.b16 %v192, %v188
    %v229 = vpack.c.b16 %v193, %v189
    %v230 = vpack.c.b16 %v194, %v190
    %v231 = vpack.c.b16 %v199, %v195
    %v232 = vpack.c.b16 %v200, %v196
    %v233 = vpack.c.b16 %v201, %v197
    %v234 = vpack.c.b16 %v202, %v198
    %267 = vmatprep.subr.bf16.mxu0 %v232
    %268 = vmatpush1.bf16.msra.mxu0 %v231
    %269 = vmatprep.subr.bf16.mxu0 %v228
    %270 = vmatpush1.bf16.msra.mxu0 %v227
    %271 = vmatprep.subr.bf16.mxu0 %v224
    %272 = vmatpush1.bf16.msra.mxu0 %v223
    %273 = vmatprep.subr.bf16.mxu0 %v220
    %274 = vmatpush1.bf16.msra.mxu0 %v219
    %275 = vmatprep.subr.bf16.mxu0 %v216
    %276 = vmatpush1.bf16.msra.mxu0 %v215
    %277 = vmatprep.subr.bf16.mxu0 %v212
    %278 = vmatpush1.bf16.msra.mxu0 %v211
    %279 = vmatprep.subr.bf16.mxu0 %v208
    %280 = vmatpush1.bf16.msra.mxu0 %v207
    %281 = vmatprep.subr.bf16.mxu0 %v204
    %282 = vmatpush1.bf16.msra.mxu0 %v203
    %283 = vmatprep.subr.bf16.mxu0 0
    %284 = vmatpush2.bf16.msra.mxu0 0
    %285 = vmatprep.subr.bf16.mxu0 0
    %286 = vmatpush2.bf16.msra.mxu0 0
    %287 = vmatprep.subr.bf16.mxu0 0
    %288 = vmatpush2.bf16.msra.mxu0 0
    %289 = vmatprep.subr.bf16.mxu0 0
    %290 = vmatpush2.bf16.msra.mxu0 0
    %291 = vmatprep.subr.bf16.mxu0 0
    %292 = vmatpush2.bf16.msra.mxu0 0
    %293 = vmatprep.subr.bf16.mxu0 0
    %294 = vmatpush2.bf16.msra.mxu0 0
    %295 = vmatprep.subr.bf16.mxu0 0
    %296 = vmatpush2.bf16.msra.mxu0 0
    %297 = vmatprep.subr.bf16.mxu0 0
    %298 = vmatpush2.bf16.msra.mxu0 0
    %299 = vmatprep.mubr.bf16.mxu0 0
    %300 = vmatmul.mubr.bf16.gmra.mxu0 %v52
    %v301 = vpop.f32.mrf.mxu0
    %v302 = vadd.f32 %v90, %v301
    %v303 = vpop.f32.mrf.mxu0
    %v304 = vadd.f32 %v94, %v303
    %v305 = vpop.f32.mrf.mxu0
    %v306 = vpop.f32.mrf.mxu0
    %307 = vdwg.mxu0
    %308 = vmatprep.subr.bf16.mxu0 %v234
    %309 = vmatpush1.bf16.msra.mxu0 %v233
    %310 = vmatprep.subr.bf16.mxu0 %v230
    %311 = vmatpush1.bf16.msra.mxu0 %v229
    %312 = vmatprep.subr.bf16.mxu0 %v226
    %313 = vmatpush1.bf16.msra.mxu0 %v225
    %314 = vmatprep.subr.bf16.mxu0 %v222
    %315 = vmatpush1.bf16.msra.mxu0 %v221
    %316 = vmatprep.subr.bf16.mxu0 %v218
    %317 = vmatpush1.bf16.msra.mxu0 %v217
    %318 = vmatprep.subr.bf16.mxu0 %v214
    %319 = vmatpush1.bf16.msra.mxu0 %v213
    %320 = vmatprep.subr.bf16.mxu0 %v210
    %321 = vmatpush1.bf16.msra.mxu0 %v209
    %322 = vmatprep.subr.bf16.mxu0 %v206
    %323 = vmatpush1.bf16.msra.mxu0 %v205
    %324 = vmatprep.subr.bf16.mxu0 0
    %325 = vmatpush2.bf16.msra.mxu0 0
    %326 = vmatprep.subr.bf16.mxu0 0
    %327 = vmatpush2.bf16.msra.mxu0 0
    %328 = vmatprep.subr.bf16.mxu0 0
    %329 = vmatpush2.bf16.msra.mxu0 0
    %330 = vmatprep.subr.bf16.mxu0 0
    %331 = vmatpush2.bf16.msra.mxu0 0
    %332 = vmatprep.subr.bf16.mxu0 0
    %333 = vmatpush2.bf16.msra.mxu0 0
    %334 = vmatprep.subr.bf16.mxu0 0
    %335 = vmatpush2.bf16.msra.mxu0 0
    %336 = vmatprep.subr.bf16.mxu0 0
    %337 = vmatpush2.bf16.msra.mxu0 0
    %338 = vmatprep.subr.bf16.mxu0 0
    %339 = vmatpush2.bf16.msra.mxu0 0
    %340 = vmatprep.mubr.bf16.mxu0 0
    %341 = vmatmul.mubr.bf16.gmra.mxu0 %v52
    %v342 = vpop.f32.mrf.mxu0
    %v343 = vadd.f32 %v98, %v342
    %v344 = vpop.f32.mrf.mxu0
    %v345 = vadd.f32 %v102, %v344
    %v346 = vpop.f32.mrf.mxu0
    %v347 = vpop.f32.mrf.mxu0
    %348 = vdwg.mxu0
    %v349 = vmax.f32 %v302, 0.0
    %v350 = vmax.f32 %v304, 0.0
    %v351 = vmax.f32 %v343, 0.0
    %v352 = vmax.f32 %v345, 0.0
    %v353 = vpack.c.bf16 %v349, %v349
    %v354 = vpack.c.bf16 %v350, %v350
    %v355 = vpack.c.bf16 %v351, %v351
    %v356 = vpack.c.bf16 %v352, %v352
    %v361 = vunpack.c.l.b16 %v353
    %v362 = vunpack.c.l.b16 %v354
    %v363 = vunpack.c.l.b16 %v355
    %v364 = vunpack.c.l.b16 %v356
    %v365 = vpack.c.b16 %v362, %v361
    %v366 = vpack.c.b16 %v364, %v363
    %369 = vst [vmem:[%s6] sm:$0xff] %v365
    %370 = vst [vmem:[%s6 + $0x8] sm:$0xff] %v366
    %v371 = vld [vmem:[#allocation5] sm:$0xf]
    %v372 = vld [vmem:[#allocation5 + $0x4] sm:$0xf]
    %v373 = vld [vmem:[#allocation5 + $0x8] sm:$0xf]
    %v374 = vld [vmem:[#allocation5 + $0xc] sm:$0xf]
    %v375 = vld [vmem:[#allocation5 + $0x10] sm:$0xf]
    %v376 = vld [vmem:[#allocation5 + $0x14] sm:$0xf]
    %v377 = vld [vmem:[#allocation5 + $0x18] sm:$0xf]
    %v378 = vld [vmem:[#allocation5 + $0x1c] sm:$0xf]
    %v379 = vld [vmem:[#allocation5 + $0x20] sm:$0xf]
    %v380 = vld [vmem:[#allocation5 + $0x24] sm:$0xf]
    %v381 = vld [vmem:[#allocation5 + $0x28] sm:$0xf]
    %v382 = vld [vmem:[#allocation5 + $0x2c] sm:$0xf]
    %v383 = vld [vmem:[#allocation5 + $0x30] sm:$0xf]
    %v384 = vld [vmem:[#allocation5 + $0x34] sm:$0xf]
    %v385 = vld [vmem:[#allocation5 + $0x38] sm:$0xf]
    %v386 = vld [vmem:[#allocation5 + $0x3c] sm:$0xf]
    %v387 = vld [vmem:[#allocation5 + $0x40] sm:$0xf]
    %v388 = vld [vmem:[#allocation5 + $0x44] sm:$0xf]
    %v389 = vld [vmem:[#allocation5 + $0x48] sm:$0xf]
    %v390 = vld [vmem:[#allocation5 + $0x4c] sm:$0xf]
    %v391 = vld [vmem:[#allocation5 + $0x50] sm:$0xf]
    %v392 = vld [vmem:[#allocation5 + $0x54] sm:$0xf]
    %v393 = vld [vmem:[#allocation5 + $0x58] sm:$0xf]
    %v394 = vld [vmem:[#allocation5 + $0x5c] sm:$0xf]
    %v395 = vld [vmem:[#allocation5 + $0x60] sm:$0xf]
    %v396 = vld [vmem:[#allocation5 + $0x64] sm:$0xf]
    %v397 = vld [vmem:[#allocation5 + $0x68] sm:$0xf]
    %v398 = vld [vmem:[#allocation5 + $0x6c] sm:$0xf]
    %v399 = vld [vmem:[#allocation5 + $0x70] sm:$0xf]
    %v400 = vld [vmem:[#allocation5 + $0x74] sm:$0xf]
    %v401 = vld [vmem:[#allocation5 + $0x78] sm:$0xf]
    %v402 = vld [vmem:[#allocation5 + $0x7c] sm:$0xf]
    %v403 = vld [vmem:[#allocation5 + $0x80] sm:$0xf]
    %v404 = vld [vmem:[#allocation5 + $0x84] sm:$0xf]
    %v405 = vld [vmem:[#allocation5 + $0x88] sm:$0xf]
    %v406 = vld [vmem:[#allocation5 + $0x8c] sm:$0xf]
    %v407 = vld [vmem:[#allocation5 + $0x90] sm:$0xf]
    %v408 = vld [vmem:[#allocation5 + $0x94] sm:$0xf]
    %v409 = vld [vmem:[#allocation5 + $0x98] sm:$0xf]
    %v410 = vld [vmem:[#allocation5 + $0x9c] sm:$0xf]
    %v411 = vld [vmem:[#allocation5 + $0xa0] sm:$0xf]
    %v412 = vld [vmem:[#allocation5 + $0xa4] sm:$0xf]
    %v413 = vld [vmem:[#allocation5 + $0xa8] sm:$0xf]
    %v414 = vld [vmem:[#allocation5 + $0xac] sm:$0xf]
    %v415 = vld [vmem:[#allocation5 + $0xb0] sm:$0xf]
    %v416 = vld [vmem:[#allocation5 + $0xb4] sm:$0xf]
    %v417 = vld [vmem:[#allocation5 + $0xb8] sm:$0xf]
    %v418 = vld [vmem:[#allocation5 + $0xbc] sm:$0xf]
    %v419 = vld [vmem:[#allocation5 + $0xc0] sm:$0xf]
    %v420 = vld [vmem:[#allocation5 + $0xc4] sm:$0xf]
    %v421 = vld [vmem:[#allocation5 + $0xc8] sm:$0xf]
    %v422 = vld [vmem:[#allocation5 + $0xcc] sm:$0xf]
    %v423 = vld [vmem:[#allocation5 + $0xd0] sm:$0xf]
    %v424 = vld [vmem:[#allocation5 + $0xd4] sm:$0xf]
    %v425 = vld [vmem:[#allocation5 + $0xd8] sm:$0xf]
    %v426 = vld [vmem:[#allocation5 + $0xdc] sm:$0xf]
    %v427 = vld [vmem:[#allocation5 + $0xe0] sm:$0xf]
    %v428 = vld [vmem:[#allocation5 + $0xe4] sm:$0xf]
    %v429 = vld [vmem:[#allocation5 + $0xe8] sm:$0xf]
    %v430 = vld [vmem:[#allocation5 + $0xec] sm:$0xf]
    %v431 = vld [vmem:[#allocation5 + $0xf0] sm:$0xf]
    %v432 = vld [vmem:[#allocation5 + $0xf4] sm:$0xf]
    %v433 = vld [vmem:[#allocation5 + $0xf8] sm:$0xf]
    %v434 = vld [vmem:[#allocation5 + $0xfc] sm:$0xf]
    %v499 = vunpack.c.l.b16 %v371
    %v500 = vunpack.c.l.b16 %v372
    %v501 = vunpack.c.l.b16 %v373
    %v502 = vunpack.c.l.b16 %v374
    %v503 = vunpack.c.l.b16 %v375
    %v504 = vunpack.c.l.b16 %v376
    %v505 = vunpack.c.l.b16 %v377
    %v506 = vunpack.c.l.b16 %v378
    %v507 = vunpack.c.l.b16 %v379
    %v508 = vunpack.c.l.b16 %v380
    %v509 = vunpack.c.l.b16 %v381
    %v510 = vunpack.c.l.b16 %v382
    %v511 = vunpack.c.l.b16 %v383
    %v512 = vunpack.c.l.b16 %v384
    %v513 = vunpack.c.l.b16 %v385
    %v514 = vunpack.c.l.b16 %v386
    %v515 = vunpack.c.l.b16 %v387
    %v516 = vunpack.c.l.b16 %v388
    %v517 = vunpack.c.l.b16 %v389
    %v518 = vunpack.c.l.b16 %v390
    %v519 = vunpack.c.l.b16 %v391
    %v520 = vunpack.c.l.b16 %v392
    %v521 = vunpack.c.l.b16 %v393
    %v522 = vunpack.c.l.b16 %v394
    %v523 = vunpack.c.l.b16 %v395
    %v524 = vunpack.c.l.b16 %v396
    %v525 = vunpack.c.l.b16 %v397
    %v526 = vunpack.c.l.b16 %v398
    %v527 = vunpack.c.l.b16 %v399
    %v528 = vunpack.c.l.b16 %v400
    %v529 = vunpack.c.l.b16 %v401
    %v530 = vunpack.c.l.b16 %v402
    %v531 = vunpack.c.l.b16 %v403
    %v532 = vunpack.c.l.b16 %v404
    %v533 = vunpack.c.l.b16 %v405
    %v534 = vunpack.c.l.b16 %v406
    %v535 = vunpack.c.l.b16 %v407
    %v536 = vunpack.c.l.b16 %v408
    %v537 = vunpack.c.l.b16 %v409
    %v538 = vunpack.c.l.b16 %v410
    %v539 = vunpack.c.l.b16 %v411
    %v540 = vunpack.c.l.b16 %v412
    %v541 = vunpack.c.l.b16 %v413
    %v542 = vunpack.c.l.b16 %v414
    %v543 = vunpack.c.l.b16 %v415
    %v544 = vunpack.c.l.b16 %v416
    %v545 = vunpack.c.l.b16 %v417
    %v546 = vunpack.c.l.b16 %v418
    %v547 = vunpack.c.l.b16 %v419
    %v548 = vunpack.c.l.b16 %v420
    %v549 = vunpack.c.l.b16 %v421
    %v550 = vunpack.c.l.b16 %v422
    %v551 = vunpack.c.l.b16 %v423
    %v552 = vunpack.c.l.b16 %v424
    %v553 = vunpack.c.l.b16 %v425
    %v554 = vunpack.c.l.b16 %v426
    %v555 = vunpack.c.l.b16 %v427
    %v556 = vunpack.c.l.b16 %v428
    %v557 = vunpack.c.l.b16 %v429
    %v558 = vunpack.c.l.b16 %v430
    %v559 = vunpack.c.l.b16 %v431
    %v560 = vunpack.c.l.b16 %v432
    %v561 = vunpack.c.l.b16 %v433
    %v562 = vunpack.c.l.b16 %v434
    %v563 = vpack.c.b16 %v500, %v499
    %v564 = vpack.c.b16 %v502, %v501
    %v565 = vpack.c.b16 %v504, %v503
    %v566 = vpack.c.b16 %v506, %v505
    %v567 = vpack.c.b16 %v508, %v507
    %v568 = vpack.c.b16 %v510, %v509
    %v569 = vpack.c.b16 %v512, %v511
    %v570 = vpack.c.b16 %v514, %v513
    %v571 = vpack.c.b16 %v516, %v515
    %v572 = vpack.c.b16 %v518, %v517
    %v573 = vpack.c.b16 %v520, %v519
    %v574 = vpack.c.b16 %v522, %v521
    %v575 = vpack.c.b16 %v524, %v523
    %v576 = vpack.c.b16 %v526, %v525
    %v577 = vpack.c.b16 %v528, %v527
    %v578 = vpack.c.b16 %v530, %v529
    %v579 = vpack.c.b16 %v532, %v531
    %v580 = vpack.c.b16 %v534, %v533
    %v581 = vpack.c.b16 %v536, %v535
    %v582 = vpack.c.b16 %v538, %v537
    %v583 = vpack.c.b16 %v540, %v539
    %v584 = vpack.c.b16 %v542, %v541
    %v585 = vpack.c.b16 %v544, %v543
    %v586 = vpack.c.b16 %v546, %v545
    %v587 = vpack.c.b16 %v548, %v547
    %v588 = vpack.c.b16 %v550, %v549
    %v589 = vpack.c.b16 %v552, %v551
    %v590 = vpack.c.b16 %v554, %v553
    %v591 = vpack.c.b16 %v556, %v555
    %v592 = vpack.c.b16 %v558, %v557
    %v593 = vpack.c.b16 %v560, %v559
    %v594 = vpack.c.b16 %v562, %v561
    %627 = vmatprep.subr.bf16.mxu0 0
    %628 = vmatpush1.bf16.msra.mxu0 %v570
    %629 = vmatprep.subr.bf16.mxu0 0
    %630 = vmatpush1.bf16.msra.mxu0 %v569
    %631 = vmatprep.subr.bf16.mxu0 0
    %632 = vmatpush1.bf16.msra.mxu0 %v568
    %633 = vmatprep.subr.bf16.mxu0 0
    %634 = vmatpush1.bf16.msra.mxu0 %v567
    %635 = vmatprep.subr.bf16.mxu0 0
    %636 = vmatpush1.bf16.msra.mxu0 %v566
    %637 = vmatprep.subr.bf16.mxu0 0
    %638 = vmatpush1.bf16.msra.mxu0 %v565
    %639 = vmatprep.subr.bf16.mxu0 0
    %640 = vmatpush1.bf16.msra.mxu0 %v564
    %641 = vmatprep.subr.bf16.mxu0 0
    %642 = vmatpush1.bf16.msra.mxu0 %v563
    %643 = vmatprep.subr.bf16.mxu0 0
    %644 = vmatpush2.bf16.msra.mxu0 %v578
    %645 = vmatprep.subr.bf16.mxu0 0
    %646 = vmatpush2.bf16.msra.mxu0 %v577
    %647 = vmatprep.subr.bf16.mxu0 0
    %648 = vmatpush2.bf16.msra.mxu0 %v576
    %649 = vmatprep.subr.bf16.mxu0 0
    %650 = vmatpush2.bf16.msra.mxu0 %v575
    %651 = vmatprep.subr.bf16.mxu0 0
    %652 = vmatpush2.bf16.msra.mxu0 %v574
    %653 = vmatprep.subr.bf16.mxu0 0
    %654 = vmatpush2.bf16.msra.mxu0 %v573
    %655 = vmatprep.subr.bf16.mxu0 0
    %656 = vmatpush2.bf16.msra.mxu0 %v572
    %657 = vmatprep.subr.bf16.mxu0 0
    %658 = vmatpush2.bf16.msra.mxu0 %v571
    %659 = vmatprep.mubr.bf16.mxu0 %v354
    %660 = vmatmul.mubr.bf16.gmra.mxu0 %v353
    %v661 = vpop.f32.mrf.mxu0
    %v662 = vadd.f32 0.0, %v661
    %v663 = vpop.f32.mrf.mxu0
    %v664 = vpop.f32.mrf.mxu0
    %v665 = vpop.f32.mrf.mxu0
    %666 = vdwg.mxu0
    %667 = vmatprep.subr.bf16.mxu0 0
    %668 = vmatpush1.bf16.msra.mxu0 %v586
    %669 = vmatprep.subr.bf16.mxu0 0
    %670 = vmatpush1.bf16.msra.mxu0 %v585
    %671 = vmatprep.subr.bf16.mxu0 0
    %672 = vmatpush1.bf16.msra.mxu0 %v584
    %673 = vmatprep.subr.bf16.mxu0 0
    %674 = vmatpush1.bf16.msra.mxu0 %v583
    %675 = vmatprep.subr.bf16.mxu0 0
    %676 = vmatpush1.bf16.msra.mxu0 %v582
    %677 = vmatprep.subr.bf16.mxu0 0
    %678 = vmatpush1.bf16.msra.mxu0 %v581
    %679 = vmatprep.subr.bf16.mxu0 0
    %680 = vmatpush1.bf16.msra.mxu0 %v580
    %681 = vmatprep.subr.bf16.mxu0 0
    %682 = vmatpush1.bf16.msra.mxu0 %v579
    %683 = vmatprep.subr.bf16.mxu0 0
    %684 = vmatpush2.bf16.msra.mxu0 %v594
    %685 = vmatprep.subr.bf16.mxu0 0
    %686 = vmatpush2.bf16.msra.mxu0 %v593
    %687 = vmatprep.subr.bf16.mxu0 0
    %688 = vmatpush2.bf16.msra.mxu0 %v592
    %689 = vmatprep.subr.bf16.mxu0 0
    %690 = vmatpush2.bf16.msra.mxu0 %v591
    %691 = vmatprep.subr.bf16.mxu0 0
    %692 = vmatpush2.bf16.msra.mxu0 %v590
    %693 = vmatprep.subr.bf16.mxu0 0
    %694 = vmatpush2.bf16.msra.mxu0 %v589
    %695 = vmatprep.subr.bf16.mxu0 0
    %696 = vmatpush2.bf16.msra.mxu0 %v588
    %697 = vmatprep.subr.bf16.mxu0 0
    %698 = vmatpush2.bf16.msra.mxu0 %v587
    %699 = vmatprep.mubr.bf16.mxu0 %v356
    %700 = vmatmul.mubr.bf16.gmra.mxu0 %v355
    %v701 = vpop.f32.mrf.mxu0
    %v702 = vadd.f32 %v662, %v701
    %v703 = vpop.f32.mrf.mxu0
    %v704 = vpop.f32.mrf.mxu0
    %v705 = vpop.f32.mrf.mxu0
    %706 = vdwg.mxu0
    %p707 = scmp.eq.s32.totalorder 0, 0
    // Predicated region
    $region30: #{sae_forward.1} parent=1 // pred_check
      %p708 = pneg %p707
    $region31: #{sae_forward.1} parent=1 // pred_check_branch
      %710 = sbr.rel (%p708) target = $region33
    $region32: #{sae_forward.1} parent=1 // pred_region
      %711 = vst [vmem:[#allocation7] sm:$0xff] %v702
    $region33: #{sae_forward.1} parent=1 // pred_fallthru
      _
    %p712 = scmp.gt.s32.totalorder 0, 0
    // Predicated region
    $region34: #{sae_forward.1} parent=1 // pred_check
      %p713 = pneg %p712
    $region35: #{sae_forward.1} parent=1 // pred_check_branch
      %715 = sbr.rel (%p713) target = $region37
    $region36: #{sae_forward.1} parent=1 // pred_region
      %v716 = vld [vmem:[#allocation7] sm:$0xff]
      %v717 = vadd.f32 %v716, %v702
      %718 = vst [vmem:[#allocation7] sm:$0xff] %v717
    $region37: #{sae_forward.1} parent=1 // pred_fallthru
      _
    // Predicated region
    $region38: #{sae_forward.1} parent=1 // pred_check
      %p719 = pneg %p707
    $region39: #{sae_forward.1} parent=1 // pred_check_branch
      %721 = sbr.rel (%p719) target = $region41
    $region40: #{sae_forward.1} parent=1 // pred_region
      %v722 = vld [vmem:[#allocation7] sm:$0xff]
      %v723 = vld [vmem:[%s4] sm:$0x1]
      %v725 = vlaneseq
      %v726 = vshrl.u32 %v725, 7
      %v727 = vsub.s32 0, %v726
      %v728 = vrot.slane %v723, %v727
      %v730 = vadd.f32 %v722, %v728
      %731 = vst [vmem:[#allocation7] sm:$0xff] %v730
    $region41: #{sae_forward.1} parent=1 // pred_fallthru
      _
    // Predicated region
    $region42: #{sae_forward.1} parent=1 // pred_check
      _
    $region43: #{sae_forward.1} parent=1 // pred_check_branch
      %733 = sbr.rel (0) target = $region45
    $region44: #{sae_forward.1} parent=1 // pred_region
      %s735 = ssub.s32 128, 128
      %736 = vsyncadd [#allocation4], %s735
      %s738 = sshll.u32 [#allocation7], 4
      %s739 = int_to_ptr.vmem [resolvable:$true] %s738
      %741 = dma.vmem_to_hbm [thread:$0]  %s739, 128, %s5, [#allocation4]
    $region45: #{sae_forward.1} parent=1 // pred_fallthru
      _
    // Predicated region
    $region46: #{sae_forward.1} parent=1 // pred_check
      _
    $region47: #{sae_forward.1} parent=1 // pred_check_branch
      %743 = sbr.rel (0) target = $region49
    $region48: #{sae_forward.1} parent=1 // pred_region
      _
    $region49: #{sae_forward.1} parent=1 // pred_fallthru
      _
    // Predicated region
    $region50: #{sae_forward.1} parent=1 // pred_check
      _
    $region51: #{sae_forward.1} parent=1 // pred_check_branch
      %745 = sbr.rel (0) target = $region53
    $region52: #{sae_forward.1} parent=1 // pred_region
      %746 = dma.done [#allocation4], 128
    $region53: #{sae_forward.1} parent=1 // pred_fallthru
      _
    // Predicated region
    $region54: #{sae_forward.1} parent=1 // pred_check
      _
    $region55: #{sae_forward.1} parent=1 // pred_check_branch
      %748 = sbr.rel (0) target = $region57
    $region56: #{sae_forward.1} parent=1 // pred_region
      _
    $region57: #{sae_forward.1} parent=1 // pred_fallthru
      _
    %749 = vsyncpa [#allocation3], 1
    %750 = vsyncpa [#allocation6], 1
    %751 = vsyncpa [#allocation4], 1

</llo_original>
